<compile_context>
chip_gen: v7x
topology: tpu7x:2x2x1
jax: 0.10.0
libtpu: 0.0.40
codegen_flags: <defaults>
</compile_context>

<pallas_src>
import functools

import jax
import jax.numpy as jnp
from jax.experimental import pallas as pl
from jax.experimental.pallas import tpu as pltpu


# ---------------------------------------------------------------------------
# Fused matmul kernels (single full-K block per grid point)
# ---------------------------------------------------------------------------
def _mm_kernel(a_ref, b_ref, bias_ref, o_ref, *, activation):
    acc = jnp.dot(a_ref[...], b_ref[...], preferred_element_type=jnp.float32)
    acc = acc + bias_ref[...]
    if activation == "relu":
        acc = jnp.maximum(acc, 0.0)
    o_ref[...] = acc.astype(o_ref.dtype)


def _mm_res_kernel(a_ref, b_ref, bias_ref, res_ref, o_ref, *, activation):
    acc = jnp.dot(a_ref[...], b_ref[...], preferred_element_type=jnp.float32)
    acc = acc + bias_ref[...] + res_ref[...]
    if activation == "relu":
        acc = jnp.maximum(acc, 0.0)
    o_ref[...] = acc.astype(o_ref.dtype)


def _mm_dual_kernel(a_ref, b_ref, bias_ref, ad_ref, bd_ref, biasd_ref, o_ref,
                    *, activation):
    # Main conv matmul + fused 1x1 downsample-projection matmul, one epilogue.
    acc = jnp.dot(a_ref[...], b_ref[...], preferred_element_type=jnp.float32)
    acc = acc + jnp.dot(ad_ref[...], bd_ref[...],
                        preferred_element_type=jnp.float32)
    acc = acc + bias_ref[...] + biasd_ref[...]
    if activation == "relu":
        acc = jnp.maximum(acc, 0.0)
    o_ref[...] = acc.astype(o_ref.dtype)


def _round_up(x, m):
    return ((x + m - 1) // m) * m


def fused_matmul(a, b, bias, *, activation="none", residual=None, proj=None,
                 tm_max=512):
    """act(a @ b + bias [+ residual | + proj_a @ proj_b + proj_bias]).

    a:(M,K), b:(K,N) are cast to bf16 for the MXU; bias:(N,) f32.
    residual:(M,N) f32 is added in the f32 epilogue.
    proj = (a_d:(M,Kd), b_d:(Kd,N), bias_d:(N,)) adds a second fused matmul.
    """
    M, K = a.shape
    K2, N = b.shape
    assert K == K2

    a_bf = a.astype(jnp.bfloat16)
    b_bf = b.astype(jnp.bfloat16)
    bias_f = bias.astype(jnp.float32).reshape(1, N)

    # --- M tiling: tm multiple of 16 (bf16 sublane pack), capped by tm_max ---
    m16 = _round_up(M, 16)
    tm = m16 if m16 <= tm_max else tm_max
    Mp = _round_up(M, tm)
    pad_m = Mp - M
    if pad_m:
        a_bf = jnp.pad(a_bf, ((0, pad_m), (0, 0)))

    # --- N tiling: 128-multiple tiles if possible, else a full-N block ------
    if N % 128 == 0:
        tn = 256 if (N % 256 == 0) else 128
    else:
        tn = N  # full-extent block bypasses the lane-128 rule (small channels)

    in_specs = [
        pl.BlockSpec((tm, K), lambda i, j: (i, 0)),   # full-K A tile
        pl.BlockSpec((K, tn), lambda i, j: (0, j)),   # full-K weight tile
        pl.BlockSpec((1, tn), lambda i, j: (0, j)),   # bias row
    ]
    args = [a_bf, b_bf, bias_f]

    if proj is not None:
        ad, bd, biasd = proj
        Kd = ad.shape[1]
        ad_bf = ad.astype(jnp.bfloat16)
        if pad_m:
            ad_bf = jnp.pad(ad_bf, ((0, pad_m), (0, 0)))
        bd_bf = bd.astype(jnp.bfloat16)
        biasd_f = biasd.astype(jnp.float32).reshape(1, N)
        in_specs += [
            pl.BlockSpec((tm, Kd), lambda i, j: (i, 0)),
            pl.BlockSpec((Kd, tn), lambda i, j: (0, j)),
            pl.BlockSpec((1, tn), lambda i, j: (0, j)),
        ]
        args += [ad_bf, bd_bf, biasd_f]
        kernel = functools.partial(_mm_dual_kernel, activation=activation)
    elif residual is not None:
        res = residual.astype(jnp.float32)
        if pad_m:
            res = jnp.pad(res, ((0, pad_m), (0, 0)))
        in_specs.append(pl.BlockSpec((tm, tn), lambda i, j: (i, j)))
        args.append(res)
        kernel = functools.partial(_mm_res_kernel, activation=activation)
    else:
        kernel = functools.partial(_mm_kernel, activation=activation)

    grid = (Mp // tm, N // tn)
    out = pl.pallas_call(
        kernel,
        out_shape=jax.ShapeDtypeStruct((Mp, N), jnp.float32),
        grid_spec=pltpu.PrefetchScalarGridSpec(
            num_scalar_prefetch=0,
            grid=grid,
            in_specs=in_specs,
            out_specs=pl.BlockSpec((tm, tn), lambda i, j: (i, j)),
        ),
        compiler_params=pltpu.CompilerParams(
            dimension_semantics=("parallel", "parallel")),
    )(*args)
    if pad_m:
        out = out[:M]
    return out


# ---------------------------------------------------------------------------
# im2col for 3x3 convs (padding=1), channels-last
# ---------------------------------------------------------------------------
def _im2col_3x3(x_nhwc, stride):
    """Returns ((B*OH*OW, 9*C), OH, OW)."""
    B, H, W, C = x_nhwc.shape
    OH = (H + 2 - 3) // stride + 1
    OW = (W + 2 - 3) // stride + 1
    xp = jnp.pad(x_nhwc, ((0, 0), (1, 1), (1, 1), (0, 0)))
    cols = []
    for kh in range(3):
        for kw in range(3):
            cols.append(xp[:, kh:kh + (OH - 1) * stride + 1:stride,
                              kw:kw + (OW - 1) * stride + 1:stride, :])
    patches = jnp.stack(cols, axis=3)                 # (B, OH, OW, 9, C)
    return patches.reshape(B * OH * OW, 9 * C), OH, OW


def conv3x3_bn_act(x_nhwc, w_mat, bias, stride, activation):
    B = x_nhwc.shape[0]
    cout = w_mat.shape[1]
    patches, OH, OW = _im2col_3x3(x_nhwc.astype(jnp.bfloat16), stride)
    out = fused_matmul(patches, w_mat, bias, activation=activation)
    return out.reshape(B, OH, OW, cout)


# ---------------------------------------------------------------------------
# Parameter prep: fold eval-mode BatchNorm into conv weight / bias (once)
# ---------------------------------------------------------------------------
def _fold_bn_into_conv(w_oihw, bn, eps=1e-5):
    inv = bn["g"] / jnp.sqrt(bn["v"] + eps)                 # (Cout,)
    w_f = w_oihw * inv[:, None, None, None]
    bias = bn["b"] - bn["m"] * inv
    cout, cin, kh, kw = w_oihw.shape
    # matmul weight layout matches im2col (kh, kw, Cin) -> Cout
    w_mat = jnp.transpose(w_f, (2, 3, 1, 0)).reshape(kh * kw * cin, cout)
    return w_mat.astype(jnp.bfloat16), bias.astype(jnp.float32)


def fold_params(raw):
    # TODO(synk): BatchNorm is folded in eval mode (running stats); training-mode
    # batch-statistics normalization is not implemented.
    p = {}
    p["w1"], p["b1"] = _fold_bn_into_conv(raw["conv1_w"], raw["bn1"])
    p["w2"], p["b2"] = _fold_bn_into_conv(raw["conv2_w"], raw["bn2"])
    if "convd_w" in raw:
        p["wd"], p["bd"] = _fold_bn_into_conv(raw["convd_w"], raw["bnd"])
    return p


def init_raw_params(key, cin, cout, stride):
    ks = jax.random.split(key, 15)
    s = 0.1

    def bn_params(k0, k1, k2, k3, c):
        return {
            "g": jax.random.uniform(k0, (c,), jnp.float32, 0.5, 1.5),
            "b": jax.random.normal(k1, (c,), jnp.float32) * s,
            "m": jax.random.normal(k2, (c,), jnp.float32) * s,
            "v": jax.random.uniform(k3, (c,), jnp.float32, 0.5, 1.5),
        }

    raw = {
        "conv1_w": jax.random.normal(ks[0], (cout, cin, 3, 3), jnp.float32) * s,
        "bn1": bn_params(ks[1], ks[2], ks[3], ks[4], cout),
        "conv2_w": jax.random.normal(ks[5], (cout, cout, 3, 3), jnp.float32) * s,
        "bn2": bn_params(ks[6], ks[7], ks[8], ks[9], cout),
    }
    if stride != 1 or cin != cout:
        raw["convd_w"] = jax.random.normal(ks[10], (cout, cin, 1, 1), jnp.float32) * s
        raw["bnd"] = bn_params(ks[11], ks[12], ks[13], ks[14], cout)
    return raw


# ---------------------------------------------------------------------------
# ResBlock forward
# ---------------------------------------------------------------------------
def resblock_forward(params, x_nchw, *, stride):
    x = jnp.transpose(x_nchw, (0, 2, 3, 1)).astype(jnp.float32)   # NHWC
    B, H, W, Cin = x.shape
    Cout = params["w1"].shape[1]

    # conv1 + bn1 + ReLU  (one fused Pallas matmul)
    h = conv3x3_bn_act(x, params["w1"], params["b1"], stride, "relu")
    OH, OW = h.shape[1], h.shape[2]

    # conv2 + bn2 + residual + final ReLU, all in a single kernel epilogue.
    patches2, _, _ = _im2col_3x3(h.astype(jnp.bfloat16), 1)
    if "wd" in params:
        # Downsample branch fused as a second matmul inside the same kernel:
        # out = relu(patches2 @ W2 + b2 + x_strided @ Wd + bd)
        xs = x[:, ::stride, ::stride, :].reshape(B * OH * OW, Cin)
        out = fused_matmul(patches2, params["w2"], params["b2"],
                           activation="relu",
                           proj=(xs, params["wd"], params["bd"]))
    else:
        ident = x.reshape(B * H * W, Cin)
        out = fused_matmul(patches2, params["w2"], params["b2"],
                           activation="relu", residual=ident)

    out = out.reshape(B, OH, OW, Cout)
    return jnp.transpose(out, (0, 3, 1, 2))                       # back to NCHW


# ---------------------------------------------------------------------------
# Pure-JAX reference (for correctness validation)
# ---------------------------------------------------------------------------
def resblock_reference(raw, x_nchw, stride, eps=1e-5):
    def conv(x, w, s, p):
        return jax.lax.conv_general_dilated(
            x, w, window_strides=(s, s), padding=[(p, p), (p, p)],
            dimension_numbers=("NCHW", "OIHW", "NCHW"))

    def bn(x, prm):
        inv = prm["g"] / jnp.sqrt(prm["v"] + eps)
        return (x * inv[None, :, None, None]
                + (prm["b"] - prm["m"] * inv)[None, :, None, None])

    out = jnp.maximum(bn(conv(x_nchw, raw["conv1_w"], stride, 1), raw["bn1"]), 0.0)
    out = bn(conv(out, raw["conv2_w"], 1, 1), raw["bn2"])
    if "convd_w" in raw:
        ident = bn(conv(x_nchw, raw["convd_w"], stride, 0), raw["bnd"])
    else:
        ident = x_nchw
    return jnp.maximum(out + ident, 0.0)


if __name__ == "__main__":
    key = jax.random.PRNGKey(0)
    k_p, k_x = jax.random.split(key)

    # --- Config 1: downsample path (in=16 -> out=32, stride=2, 16x16 input) ---
    B, Cin, Cout, H, W, stride = 2, 16, 32, 16, 16, 2
    raw = init_raw_params(k_p, Cin, Cout, stride)
    params = fold_params(raw)
    x = jax.random.normal(k_x, (B, Cin, H, W), jnp.float32)

    fwd = jax.jit(functools.partial(resblock_forward, stride=stride))
    out = jax.block_until_ready(fwd(params, x))
    assert out.shape == (B, Cout, H // stride, W // stride), out.shape
    assert out.dtype == jnp.float32
    assert bool(jnp.all(jnp.isfinite(out)))

    ref = resblock_reference(raw, x, stride)
    err = float(jnp.max(jnp.abs(out - ref)))
    scale = float(jnp.max(jnp.abs(ref))) + 1e-6
    assert err / scale < 3e-2, f"rel err {err / scale}"

    # --- Config 2: pure identity path (in == out == 32, stride=1) ---
    raw2 = init_raw_params(jax.random.PRNGKey(1), Cout, Cout, 1)
    params2 = fold_params(raw2)
    x2 = jax.random.normal(jax.random.PRNGKey(2), (B, Cout, H, W), jnp.float32)
    fwd2 = jax.jit(functools.partial(resblock_forward, stride=1))
    out2 = jax.block_until_ready(fwd2(params2, x2))
    assert out2.shape == (B, Cout, H, W), out2.shape
    ref2 = resblock_reference(raw2, x2, 1)
    err2 = float(jnp.max(jnp.abs(out2 - ref2)))
    scale2 = float(jnp.max(jnp.abs(ref2))) + 1e-6
    assert err2 / scale2 < 3e-2, f"rel err {err2 / scale2}"

    print("KERNEL_OK")
</pallas_src>

<mosaic_0001>
module attributes {stable_mosaic.version = 11 : i64} {
  func.func @_mm_kernel(%arg0: i32, %arg1: i32, %arg2: memref<128x144xbf16, #tpu.memory_space<vmem>>, %arg3: memref<144x32xbf16, #tpu.memory_space<vmem>>, %arg4: memref<1x32xf32, #tpu.memory_space<vmem>>, %arg5: memref<128x32xf32, #tpu.memory_space<vmem>>) attributes {dimension_semantics = [#tpu.dimension_semantics<parallel>, #tpu.dimension_semantics<parallel>], iteration_bounds = array<i64: 1, 1>, scalar_prefetch = 0 : i64, scratch_operands = 0 : i64, tpu.core_type = #tpu.core_type<tc>, window_params = [{transform_indices = @transform_0, window_bounds = array<i64: 128, 144>}, {transform_indices = @transform_1, window_bounds = array<i64: 144, 32>}, {transform_indices = @transform_2, window_bounds = array<i64: 1, 32>}, {transform_indices = @transform_3, window_bounds = array<i64: 128, 32>}]} {
    %c0 = arith.constant 0 : index
    %c0_0 = arith.constant 0 : index
    %0 = vector.load %arg2[%c0, %c0_0] : memref<128x144xbf16, #tpu.memory_space<vmem>>, vector<128x144xbf16>
    %c0_1 = arith.constant 0 : index
    %c0_2 = arith.constant 0 : index
    %1 = vector.load %arg3[%c0_1, %c0_2] : memref<144x32xbf16, #tpu.memory_space<vmem>>, vector<144x32xbf16>
    %cst = arith.constant dense<0.000000e+00> : vector<128x32xf32>
    %2 = tpu.matmul %0, %1, %cst {dimension_numbers = #tpu.dot_dimension_numbers<[1], [0], [0], [1], [0, 0, 1, 1], [], []>} : vector<128x144xbf16>, vector<144x32xbf16>, vector<128x32xf32> -> vector<128x32xf32>
    %c0_3 = arith.constant 0 : index
    %c0_4 = arith.constant 0 : index
    %3 = vector.load %arg4[%c0_3, %c0_4] : memref<1x32xf32, #tpu.memory_space<vmem>>, vector<1x32xf32>
    %4 = vector.broadcast %3 : vector<1x32xf32> to vector<128x32xf32>
    %5 = arith.addf %2, %4 : vector<128x32xf32>
    %cst_5 = arith.constant 0.000000e+00 : f32
    %6 = vector.broadcast %cst_5 : f32 to vector<128x32xf32>
    %7 = arith.maximumf %5, %6 : vector<128x32xf32>
    %c0_6 = arith.constant 0 : index
    %c0_7 = arith.constant 0 : index
    %8 = vector.load %arg5[%c0_6, %c0_7] : memref<128x32xf32, #tpu.memory_space<vmem>>, vector<128x32xf32>
    tpu.vector_store %arg5[%c0_6, %c0_7], %7 {strides = array<i32>} : memref<128x32xf32, #tpu.memory_space<vmem>>, vector<128x32xf32>,
    return
  }
  func.func @transform_0(%arg0: i32, %arg1: i32) -> (i32, i32) {
    %c0_i32 = arith.constant 0 : i32
    %c0_i32_0 = arith.constant 0 : i32
    return %arg0, %c0_i32 : i32, i32
  }
  func.func @transform_1(%arg0: i32, %arg1: i32) -> (i32, i32) {
    %c0_i32 = arith.constant 0 : i32
    %c0_i32_0 = arith.constant 0 : i32
    return %c0_i32, %arg1 : i32, i32
  }
  func.func @transform_2(%arg0: i32, %arg1: i32) -> (i32, i32) {
    %c0_i32 = arith.constant 0 : i32
    %c0_i32_0 = arith.constant 0 : i32
    return %c0_i32, %arg1 : i32, i32
  }
  func.func @transform_3(%arg0: i32, %arg1: i32) -> (i32, i32) {
    %c0_i32 = arith.constant 0 : i32
    return %arg0, %arg1 : i32, i32
  }
}

module attributes {stable_mosaic.version = 11 : i64} {
  func.func @_mm_dual_kernel(%arg0: i32, %arg1: i32, %arg2: memref<128x288xbf16, #tpu.memory_space<vmem>>, %arg3: memref<288x32xbf16, #tpu.memory_space<vmem>>, %arg4: memref<1x32xf32, #tpu.memory_space<vmem>>, %arg5: memref<128x16xbf16, #tpu.memory_space<vmem>>, %arg6: memref<16x32xbf16, #tpu.memory_space<vmem>>, %arg7: memref<1x32xf32, #tpu.memory_space<vmem>>, %arg8: memref<128x32xf32, #tpu.memory_space<vmem>>) attributes {dimension_semantics = [#tpu.dimension_semantics<parallel>, #tpu.dimension_semantics<parallel>], iteration_bounds = array<i64: 1, 1>, scalar_prefetch = 0 : i64, scratch_operands = 0 : i64, tpu.core_type = #tpu.core_type<tc>, window_params = [{transform_indices = @transform_0, window_bounds = array<i64: 128, 288>}, {transform_indices = @transform_1, window_bounds = array<i64: 288, 32>}, {transform_indices = @transform_2, window_bounds = array<i64: 1, 32>}, {transform_indices = @transform_3, window_bounds = array<i64: 128, 16>}, {transform_indices = @transform_4, window_bounds = array<i64: 16, 32>}, {transform_indices = @transform_5, window_bounds = array<i64: 1, 32>}, {transform_indices = @transform_6, window_bounds = array<i64: 128, 32>}]} {
    %c0 = arith.constant 0 : index
    %c0_0 = arith.constant 0 : index
    %0 = vector.load %arg2[%c0, %c0_0] : memref<128x288xbf16, #tpu.memory_space<vmem>>, vector<128x288xbf16>
    %c0_1 = arith.constant 0 : index
    %c0_2 = arith.constant 0 : index
    %1 = vector.load %arg3[%c0_1, %c0_2] : memref<288x32xbf16, #tpu.memory_space<vmem>>, vector<288x32xbf16>
    %cst = arith.constant dense<0.000000e+00> : vector<128x32xf32>
    %2 = tpu.matmul %0, %1, %cst {dimension_numbers = #tpu.dot_dimension_numbers<[1], [0], [0], [1], [0, 0, 1, 1], [], []>} : vector<128x288xbf16>, vector<288x32xbf16>, vector<128x32xf32> -> vector<128x32xf32>
    %c0_3 = arith.constant 0 : index
    %c0_4 = arith.constant 0 : index
    %3 = vector.load %arg5[%c0_3, %c0_4] : memref<128x16xbf16, #tpu.memory_space<vmem>>, vector<128x16xbf16>
    %c0_5 = arith.constant 0 : index
    %c0_6 = arith.constant 0 : index
    %4 = vector.load %arg6[%c0_5, %c0_6] : memref<16x32xbf16, #tpu.memory_space<vmem>>, vector<16x32xbf16>
    %cst_7 = arith.constant dense<0.000000e+00> : vector<128x32xf32>
    %5 = tpu.matmul %3, %4, %cst_7 {dimension_numbers = #tpu.dot_dimension_numbers<[1], [0], [0], [1], [0, 0, 1, 1], [], []>} : vector<128x16xbf16>, vector<16x32xbf16>, vector<128x32xf32> -> vector<128x32xf32>
    %6 = arith.addf %2, %5 : vector<128x32xf32>
    %c0_8 = arith.constant 0 : index
    %c0_9 = arith.constant 0 : index
    %7 = vector.load %arg4[%c0_8, %c0_9] : memref<1x32xf32, #tpu.memory_space<vmem>>, vector<1x32xf32>
    %8 = vector.broadcast %7 : vector<1x32xf32> to vector<128x32xf32>
    %9 = arith.addf %6, %8 : vector<128x32xf32>
    %c0_10 = arith.constant 0 : index
    %c0_11 = arith.constant 0 : index
    %10 = vector.load %arg7[%c0_10, %c0_11] : memref<1x32xf32, #tpu.memory_space<vmem>>, vector<1x32xf32>
    %11 = vector.broadcast %10 : vector<1x32xf32> to vector<128x32xf32>
    %12 = arith.addf %9, %11 : vector<128x32xf32>
    %cst_12 = arith.constant 0.000000e+00 : f32
    %13 = vector.broadcast %cst_12 : f32 to vector<128x32xf32>
    %14 = arith.maximumf %12, %13 : vector<128x32xf32>
    %c0_13 = arith.constant 0 : index
    %c0_14 = arith.constant 0 : index
    %15 = vector.load %arg8[%c0_13, %c0_14] : memref<128x32xf32, #tpu.memory_space<vmem>>, vector<128x32xf32>
    tpu.vector_store %arg8[%c0_13, %c0_14], %14 {strides = array<i32>} : memref<128x32xf32, #tpu.memory_space<vmem>>, vector<128x32xf32>,
    return
  }
  func.func @transform_0(%arg0: i32, %arg1: i32) -> (i32, i32) {
    %c0_i32 = arith.constant 0 : i32
    %c0_i32_0 = arith.constant 0 : i32
    return %arg0, %c0_i32 : i32, i32
  }
  func.func @transform_1(%arg0: i32, %arg1: i32) -> (i32, i32) {
    %c0_i32 = arith.constant 0 : i32
    %c0_i32_0 = arith.constant 0 : i32
    return %c0_i32, %arg1 : i32, i32
  }
  func.func @transform_2(%arg0: i32, %arg1: i32) -> (i32, i32) {
    %c0_i32 = arith.constant 0 : i32
    %c0_i32_0 = arith.constant 0 : i32
    return %c0_i32, %arg1 : i32, i32
  }
  func.func @transform_3(%arg0: i32, %arg1: i32) -> (i32, i32) {
    %c0_i32 = arith.constant 0 : i32
    %c0_i32_0 = arith.constant 0 : i32
    return %arg0, %c0_i32 : i32, i32
  }
  func.func @transform_4(%arg0: i32, %arg1: i32) -> (i32, i32) {
    %c0_i32 = arith.constant 0 : i32
    %c0_i32_0 = arith.constant 0 : i32
    return %c0_i32, %arg1 : i32, i32
  }
  func.func @transform_5(%arg0: i32, %arg1: i32) -> (i32, i32) {
    %c0_i32 = arith.constant 0 : i32
    %c0_i32_0 = arith.constant 0 : i32
    return %c0_i32, %arg1 : i32, i32
  }
  func.func @transform_6(%arg0: i32, %arg1: i32) -> (i32, i32) {
    %c0_i32 = arith.constant 0 : i32
    return %arg0, %arg1 : i32, i32
  }
}

</mosaic_0001>

<llo_original>
// kernel: resblock_forward.2
$region0: #{resblock_forward.2}
  #allocation0 [shape = 'u32[]', space=smem, size = 0x4, offset = 0x4, fixed_abs, tag = 'smem constant byte address 0x4 - core index']
  #allocation1 [shape = 'u32[144,128]{1,0:T(1,128)}', space=vmem, size = 0x12000, scoped, tag = 'internal scratch']
  %s0 = inlined_call_operand.vmem [shape: bf16[128,144], index: 0, kind: input, shape index: {}]
  %s1 = inlined_call_operand.vmem [shape: bf16[144,32], index: 1, kind: input, shape index: {}]
  %s2 = inlined_call_operand.vmem [shape: f32[1,32], index: 2, kind: input, shape index: {}]
  %s3 = inlined_call_operand.vmem [shape: f32[128,32], index: 3, kind: output, shape index: {}]
  %s4 = sld [smem:[#allocation0]]
  $region22: #{resblock_forward.2} parent=0
    _
  %s6 = ssub.s32 1, %s4
  %s7 = scalar_select 0, %s6, %s4
  // Predicated region
  $region2: #{resblock_forward.2} parent=0 // pred_check
    _
  $region3: #{resblock_forward.2} parent=0 // pred_check_branch
    %9 = sbr.rel (0) target = $region5
  $region4: #{resblock_forward.2} parent=0 // pred_region
    _
  $region5: #{resblock_forward.2} parent=0 // pred_fallthru
    _
  // Predicated region
  $region6: #{resblock_forward.2} parent=0 // pred_check
    _
  $region7: #{resblock_forward.2} parent=0 // pred_check_branch
    %11 = sbr.rel (0) target = $region9
  $region8: #{resblock_forward.2} parent=0 // pred_region
    _
  $region9: #{resblock_forward.2} parent=0 // pred_fallthru
    _
  // Predicated region
  $region10: #{resblock_forward.2} parent=0 // pred_check
    _
  $region11: #{resblock_forward.2} parent=0 // pred_check_branch
    %13 = sbr.rel (0) target = $region13
  $region12: #{resblock_forward.2} parent=0 // pred_region
    _
  $region13: #{resblock_forward.2} parent=0 // pred_fallthru
    _
  %v15 = vld [vmem:[%s0] sm:$0xff]
  %v16 = vld [vmem:[%s0 + $0x8] sm:$0xff]
  %v17 = vld [vmem:[%s0 + $0x10] sm:$0xff]
  %v18 = vld [vmem:[%s0 + $0x18] sm:$0xff]
  %v19 = vld [vmem:[%s0 + $0x20] sm:$0xff]
  %v20 = vld [vmem:[%s0 + $0x28] sm:$0xff]
  %v21 = vld [vmem:[%s0 + $0x30] sm:$0xff]
  %v22 = vld [vmem:[%s0 + $0x38] sm:$0xff]
  %v23 = vld [vmem:[%s0 + $0x40] sm:$0xff]
  %v24 = vld [vmem:[%s0 + $0x48] sm:$0xff]
  %v25 = vld [vmem:[%s0 + $0x50] sm:$0xff]
  %v26 = vld [vmem:[%s0 + $0x58] sm:$0xff]
  %v27 = vld [vmem:[%s0 + $0x60] sm:$0xff]
  %v28 = vld [vmem:[%s0 + $0x68] sm:$0xff]
  %v29 = vld [vmem:[%s0 + $0x70] sm:$0xff]
  %v30 = vld [vmem:[%s0 + $0x78] sm:$0xff]
  %v31 = vld [vmem:[%s1] sm:$0xf]
  %v32 = vld [vmem:[%s1 + $0x4] sm:$0xf]
  %v33 = vld [vmem:[%s1 + $0x8] sm:$0xf]
  %v34 = vld [vmem:[%s1 + $0xc] sm:$0xf]
  %v35 = vld [vmem:[%s1 + $0x10] sm:$0xf]
  %v36 = vld [vmem:[%s1 + $0x14] sm:$0xf]
  %v37 = vld [vmem:[%s1 + $0x18] sm:$0xf]
  %v38 = vld [vmem:[%s1 + $0x1c] sm:$0xf]
  %v39 = vld [vmem:[%s1 + $0x20] sm:$0xf]
  %v40 = vld [vmem:[%s1 + $0x24] sm:$0xf]
  %v41 = vld [vmem:[%s1 + $0x28] sm:$0xf]
  %v42 = vld [vmem:[%s1 + $0x2c] sm:$0xf]
  %v43 = vld [vmem:[%s1 + $0x30] sm:$0xf]
  %v44 = vld [vmem:[%s1 + $0x34] sm:$0xf]
  %v45 = vld [vmem:[%s1 + $0x38] sm:$0xf]
  %v46 = vld [vmem:[%s1 + $0x3c] sm:$0xf]
  %v47 = vld [vmem:[%s1 + $0x40] sm:$0xf]
  %v48 = vld [vmem:[%s1 + $0x44] sm:$0xf]
  %v49 = vld [vmem:[%s2] sm:$0x1]
  %v51 = vlaneseq
  %v52 = vshrl.u32 %v51, 7
  %v53 = vsub.s32 0, %v52
  %v54 = vrot.slane %v49, %v53
  %v72 = vunpack.c.l.b16 %v15
  %v73 = vunpack.c.h.b16 %v15
  %v74 = vunpack.c.l.b16 %v16
  %v75 = vunpack.c.h.b16 %v16
  %v76 = vunpack.c.l.b16 %v17
  %v77 = vunpack.c.h.b16 %v17
  %v78 = vunpack.c.l.b16 %v18
  %v79 = vunpack.c.h.b16 %v18
  %v80 = vunpack.c.l.b16 %v19
  %v81 = vunpack.c.h.b16 %v19
  %v82 = vunpack.c.l.b16 %v20
  %v83 = vunpack.c.h.b16 %v20
  %v84 = vunpack.c.l.b16 %v21
  %v85 = vunpack.c.h.b16 %v21
  %v86 = vunpack.c.l.b16 %v22
  %v87 = vunpack.c.h.b16 %v22
  %v88 = vunpack.c.l.b16 %v23
  %v89 = vunpack.c.h.b16 %v23
  %v90 = vunpack.c.l.b16 %v24
  %v91 = vunpack.c.h.b16 %v24
  %v92 = vunpack.c.l.b16 %v25
  %v93 = vunpack.c.h.b16 %v25
  %v94 = vunpack.c.l.b16 %v26
  %v95 = vunpack.c.h.b16 %v26
  %v96 = vunpack.c.l.b16 %v27
  %v97 = vunpack.c.h.b16 %v27
  %v98 = vunpack.c.l.b16 %v28
  %v99 = vunpack.c.h.b16 %v28
  %v100 = vunpack.c.l.b16 %v29
  %v101 = vunpack.c.h.b16 %v29
  %v102 = vunpack.c.l.b16 %v30
  %v103 = vunpack.c.h.b16 %v30
  %v104 = vpack.c.b16 %v74, %v72
  %v105 = vpack.c.b16 %v75, %v73
  %v106 = vpack.c.b16 %v78, %v76
  %v107 = vpack.c.b16 %v79, %v77
  %v108 = vpack.c.b16 %v82, %v80
  %v109 = vpack.c.b16 %v83, %v81
  %v110 = vpack.c.b16 %v86, %v84
  %v111 = vpack.c.b16 %v87, %v85
  %v112 = vpack.c.b16 %v90, %v88
  %v113 = vpack.c.b16 %v91, %v89
  %v114 = vpack.c.b16 %v94, %v92
  %v115 = vpack.c.b16 %v95, %v93
  %v116 = vpack.c.b16 %v98, %v96
  %v117 = vpack.c.b16 %v99, %v97
  %v118 = vpack.c.b16 %v102, %v100
  %v119 = vpack.c.b16 %v103, %v101
  %v146 = vunpack.c.l.b16 %v31
  %v147 = vunpack.c.l.b16 %v32
  %v148 = vunpack.c.l.b16 %v33
  %v149 = vunpack.c.l.b16 %v34
  %v150 = vunpack.c.l.b16 %v35
  %v151 = vunpack.c.l.b16 %v36
  %v152 = vunpack.c.l.b16 %v37
  %v153 = vunpack.c.l.b16 %v38
  %v154 = vunpack.c.l.b16 %v39
  %v155 = vunpack.c.l.b16 %v40
  %v156 = vunpack.c.l.b16 %v41
  %v157 = vunpack.c.l.b16 %v42
  %v158 = vunpack.c.l.b16 %v43
  %v159 = vunpack.c.l.b16 %v44
  %v160 = vunpack.c.l.b16 %v45
  %v161 = vunpack.c.l.b16 %v46
  %v162 = vunpack.c.l.b16 %v47
  %v163 = vunpack.c.l.b16 %v48
  %v164 = vpack.c.b16 %v147, %v146
  %v165 = vpack.c.b16 %v149, %v148
  %v166 = vpack.c.b16 %v151, %v150
  %v167 = vpack.c.b16 %v153, %v152
  %v168 = vpack.c.b16 %v155, %v154
  %v169 = vpack.c.b16 %v157, %v156
  %v170 = vpack.c.b16 %v159, %v158
  %v171 = vpack.c.b16 %v161, %v160
  %v172 = vpack.c.b16 %v163, %v162
  %vm182 = vcmask 130048
  %v184 = vsel %vm182, %v105, 0
  %v187 = vsel %vm182, %v107, 0
  %v190 = vsel %vm182, %v109, 0
  %v193 = vsel %vm182, %v111, 0
  %v196 = vsel %vm182, %v113, 0
  %v199 = vsel %vm182, %v115, 0
  %v202 = vsel %vm182, %v117, 0
  %v205 = vsel %vm182, %v119, 0
  %207 = vmatprep.subr.bf16.mxu0 0
  %208 = vmatpush1.bf16.msra.mxu0 %v164
  %209 = vmatprep.subr.bf16.mxu0 0
  %210 = vmatpush1.bf16.msra.mxu0 %v165
  %211 = vmatprep.subr.bf16.mxu0 0
  %212 = vmatpush1.bf16.msra.mxu0 %v166
  %213 = vmatprep.subr.bf16.mxu0 0
  %214 = vmatpush1.bf16.msra.mxu0 %v167
  %215 = vmatprep.subr.bf16.mxu0 0
  %216 = vmatpush1.bf16.msra.mxu0 %v168
  %217 = vmatprep.subr.bf16.mxu0 0
  %218 = vmatpush1.bf16.msra.mxu0 %v169
  %219 = vmatprep.subr.bf16.mxu0 0
  %220 = vmatpush1.bf16.msra.mxu0 %v170
  %221 = vmatprep.subr.bf16.mxu0 0
  %222 = vmatpush1.bf16.msra.mxu0 %v171
  %223 = vmatprep.subr.bf16.mxu0 0
  %224 = vmatpush1.bf16.msra.mxu0 %v172
  %225 = vmatprep.subr.bf16.mxu0 0
  %226 = vmatpush1.bf16.msra.mxu0 0
  %227 = vmatprep.subr.bf16.mxu0 0
  %228 = vmatpush1.bf16.msra.mxu0 0
  %229 = vmatprep.subr.bf16.mxu0 0
  %230 = vmatpush1.bf16.msra.mxu0 0
  %231 = vmatprep.subr.bf16.mxu0 0
  %232 = vmatpush1.bf16.msra.mxu0 0
  %233 = vmatprep.subr.bf16.mxu0 0
  %234 = vmatpush1.bf16.msra.mxu0 0
  %235 = vmatprep.subr.bf16.mxu0 0
  %236 = vmatpush1.bf16.msra.mxu0 0
  %237 = vmatprep.subr.bf16.mxu0 0
  %238 = vmatpush1.bf16.msra.mxu0 0
  %239 = vmatprep.mubr.bf16.mxu0 %v184
  %240 = vmatmul.mubr.bf16.gmra.mrb[0].mxu0 %v104
  %v241 = vpop.f32.mrb[0].mxu0
  %v242 = vadd.f32 %v54, %v241
  %v243 = vpop.f32.mrb[0].mxu0
  %v244 = vpop.f32.mrb[0].mxu0
  %v245 = vadd.f32 %v54, %v244
  %v246 = vpop.f32.mrb[0].mxu0
  %247 = vmatprep.mubr.bf16.mxu0 %v187
  %248 = vmatmul.mubr.bf16.gmra.mrb[0].mxu0 %v106
  %v249 = vpop.f32.mrb[0].mxu0
  %v250 = vadd.f32 %v54, %v249
  %v251 = vpop.f32.mrb[0].mxu0
  %v252 = vpop.f32.mrb[0].mxu0
  %v253 = vadd.f32 %v54, %v252
  %v254 = vpop.f32.mrb[0].mxu0
  %255 = vmatprep.mubr.bf16.mxu0 %v190
  %256 = vmatmul.mubr.bf16.gmra.mrb[0].mxu0 %v108
  %v257 = vpop.f32.mrb[0].mxu0
  %v258 = vadd.f32 %v54, %v257
  %v259 = vpop.f32.mrb[0].mxu0
  %v260 = vpop.f32.mrb[0].mxu0
  %v261 = vadd.f32 %v54, %v260
  %v262 = vpop.f32.mrb[0].mxu0
  %263 = vmatprep.mubr.bf16.mxu0 %v193
  %264 = vmatmul.mubr.bf16.gmra.mrb[0].mxu0 %v110
  %v265 = vpop.f32.mrb[0].mxu0
  %v266 = vadd.f32 %v54, %v265
  %v267 = vpop.f32.mrb[0].mxu0
  %v268 = vpop.f32.mrb[0].mxu0
  %v269 = vadd.f32 %v54, %v268
  %v270 = vpop.f32.mrb[0].mxu0
  %271 = vmatprep.mubr.bf16.mxu0 %v196
  %272 = vmatmul.mubr.bf16.gmra.mrb[0].mxu0 %v112
  %v273 = vpop.f32.mrb[0].mxu0
  %v274 = vadd.f32 %v54, %v273
  %v275 = vpop.f32.mrb[0].mxu0
  %v276 = vpop.f32.mrb[0].mxu0
  %v277 = vadd.f32 %v54, %v276
  %v278 = vpop.f32.mrb[0].mxu0
  %279 = vmatprep.mubr.bf16.mxu0 %v199
  %280 = vmatmul.mubr.bf16.gmra.mrb[0].mxu0 %v114
  %v281 = vpop.f32.mrb[0].mxu0
  %v282 = vadd.f32 %v54, %v281
  %v283 = vpop.f32.mrb[0].mxu0
  %v284 = vpop.f32.mrb[0].mxu0
  %v285 = vadd.f32 %v54, %v284
  %v286 = vpop.f32.mrb[0].mxu0
  %287 = vmatprep.mubr.bf16.mxu0 %v202
  %288 = vmatmul.mubr.bf16.gmra.mrb[0].mxu0 %v116
  %v289 = vpop.f32.mrb[0].mxu0
  %v290 = vadd.f32 %v54, %v289
  %v291 = vpop.f32.mrb[0].mxu0
  %v292 = vpop.f32.mrb[0].mxu0
  %v293 = vadd.f32 %v54, %v292
  %v294 = vpop.f32.mrb[0].mxu0
  %295 = vmatprep.mubr.bf16.mxu0 %v205
  %296 = vmatmul.mubr.bf16.gmra.mrb[0].mxu0 %v118
  %v297 = vpop.f32.mrb[0].mxu0
  %v298 = vadd.f32 %v54, %v297
  %v299 = vpop.f32.mrb[0].mxu0
  %v300 = vpop.f32.mrb[0].mxu0
  %v301 = vadd.f32 %v54, %v300
  %v302 = vpop.f32.mrb[0].mxu0
  %303 = vdwg.mxu0
  %v304 = vmax.f32 %v242, 0.0
  %v305 = vmax.f32 %v245, 0.0
  %v306 = vmax.f32 %v250, 0.0
  %v307 = vmax.f32 %v253, 0.0
  %v308 = vmax.f32 %v258, 0.0
  %v309 = vmax.f32 %v261, 0.0
  %v310 = vmax.f32 %v266, 0.0
  %v311 = vmax.f32 %v269, 0.0
  %v312 = vmax.f32 %v274, 0.0
  %v313 = vmax.f32 %v277, 0.0
  %v314 = vmax.f32 %v282, 0.0
  %v315 = vmax.f32 %v285, 0.0
  %v316 = vmax.f32 %v290, 0.0
  %v317 = vmax.f32 %v293, 0.0
  %v318 = vmax.f32 %v298, 0.0
  %v319 = vmax.f32 %v301, 0.0
  %vm320 = vcmask 261120
  %321 = vst.msk [vmem:[%s3] sm:$0xff] %vm320, %v304
  %322 = vst.msk [vmem:[%s3 + $0x8] sm:$0xff] %vm320, %v305
  %323 = vst.msk [vmem:[%s3 + $0x10] sm:$0xff] %vm320, %v306
  %324 = vst.msk [vmem:[%s3 + $0x18] sm:$0xff] %vm320, %v307
  %325 = vst.msk [vmem:[%s3 + $0x20] sm:$0xff] %vm320, %v308
  %326 = vst.msk [vmem:[%s3 + $0x28] sm:$0xff] %vm320, %v309
  %327 = vst.msk [vmem:[%s3 + $0x30] sm:$0xff] %vm320, %v310
  %328 = vst.msk [vmem:[%s3 + $0x38] sm:$0xff] %vm320, %v311
  %329 = vst.msk [vmem:[%s3 + $0x40] sm:$0xff] %vm320, %v312
  %330 = vst.msk [vmem:[%s3 + $0x48] sm:$0xff] %vm320, %v313
  %331 = vst.msk [vmem:[%s3 + $0x50] sm:$0xff] %vm320, %v314
  %332 = vst.msk [vmem:[%s3 + $0x58] sm:$0xff] %vm320, %v315
  %333 = vst.msk [vmem:[%s3 + $0x60] sm:$0xff] %vm320, %v316
  %334 = vst.msk [vmem:[%s3 + $0x68] sm:$0xff] %vm320, %v317
  %335 = vst.msk [vmem:[%s3 + $0x70] sm:$0xff] %vm320, %v318
  %336 = vst.msk [vmem:[%s3 + $0x78] sm:$0xff] %vm320, %v319
  // Predicated region
  $region14: #{resblock_forward.2} parent=0 // pred_check
    _
  $region15: #{resblock_forward.2} parent=0 // pred_check_branch
    %338 = sbr.rel (0) target = $region17
  $region16: #{resblock_forward.2} parent=0 // pred_region
    _
  $region17: #{resblock_forward.2} parent=0 // pred_fallthru
    _
  // Predicated region
  $region18: #{resblock_forward.2} parent=0 // pred_check
    _
  $region19: #{resblock_forward.2} parent=0 // pred_check_branch
    %340 = sbr.rel (0) target = $region21
  $region20: #{resblock_forward.2} parent=0 // pred_region
    _
  $region21: #{resblock_forward.2} parent=0 // pred_fallthru
    _

// kernel: resblock_forward.3
$region0: #{resblock_forward.3}
  #allocation0 [shape = 'u32[]', space=smem, size = 0x4, offset = 0x4, fixed_abs, tag = 'smem constant byte address 0x4 - core index']
  #allocation1 [shape = 'u32[144,128]{1,0:T(1,128)}', space=vmem, size = 0x12000, scoped, tag = 'internal scratch']
  %s0 = inlined_call_operand.vmem [shape: bf16[128,288], index: 0, kind: input, shape index: {}]
  %s1 = inlined_call_operand.vmem [shape: bf16[288,32], index: 1, kind: input, shape index: {}]
  %s2 = inlined_call_operand.vmem [shape: f32[1,32], index: 2, kind: input, shape index: {}]
  %s3 = inlined_call_operand.vmem [shape: bf16[128,16], index: 3, kind: input, shape index: {}]
  %s4 = inlined_call_operand.vmem [shape: bf16[16,32], index: 4, kind: input, shape index: {}]
  %s5 = inlined_call_operand.vmem [shape: f32[1,32], index: 5, kind: input, shape index: {}]
  %s6 = inlined_call_operand.hbm [shape: f32[128,32], index: 6, kind: output, shape index: {}]
  %s7 = sld [smem:[#allocation0]]
  $region34: #{resblock_forward.3} parent=0
    _
  %s9 = ssub.s32 1, %s7
  %s10 = scalar_select 0, %s9, %s7
  $region1: #{resblock_forward.3} parent=0
    #allocation2 [shape = 'u8[65536]{0}', space=vmem, size = 0x10000, scoped, tag = 'output window, operand 0, single buffered']
    #allocation3 [shape = 's32[1]{0}', space=sflag, size = 0x4, scoped, tag = 'scoped memory for resblock_forward.3']
    %11 = vsyncpa [#allocation3], 0
    // Predicated region
    $region2: #{resblock_forward.3} parent=1 // pred_check
      _
    $region3: #{resblock_forward.3} parent=1 // pred_check_branch
      %13 = sbr.rel (0) target = $region5
    $region4: #{resblock_forward.3} parent=1 // pred_region
      _
    $region5: #{resblock_forward.3} parent=1 // pred_fallthru
      _
    // Predicated region
    $region6: #{resblock_forward.3} parent=1 // pred_check
      _
    $region7: #{resblock_forward.3} parent=1 // pred_check_branch
      %15 = sbr.rel (0) target = $region9
    $region8: #{resblock_forward.3} parent=1 // pred_region
      _
    $region9: #{resblock_forward.3} parent=1 // pred_fallthru
      _
    // Predicated region
    $region10: #{resblock_forward.3} parent=1 // pred_check
      _
    $region11: #{resblock_forward.3} parent=1 // pred_check_branch
      %17 = sbr.rel (0) target = $region13
    $region12: #{resblock_forward.3} parent=1 // pred_region
      _
    $region13: #{resblock_forward.3} parent=1 // pred_fallthru
      _
    // Predicated region
    $region14: #{resblock_forward.3} parent=1 // pred_check
      _
    $region15: #{resblock_forward.3} parent=1 // pred_check_branch
      %19 = sbr.rel (0) target = $region17
    $region16: #{resblock_forward.3} parent=1 // pred_region
      _
    $region17: #{resblock_forward.3} parent=1 // pred_fallthru
      _
    // Predicated region
    $region18: #{resblock_forward.3} parent=1 // pred_check
      _
    $region19: #{resblock_forward.3} parent=1 // pred_check_branch
      %21 = sbr.rel (0) target = $region21
    $region20: #{resblock_forward.3} parent=1 // pred_region
      _
    $region21: #{resblock_forward.3} parent=1 // pred_fallthru
      _
    // Predicated region
    $region22: #{resblock_forward.3} parent=1 // pred_check
      _
    $region23: #{resblock_forward.3} parent=1 // pred_check_branch
      %23 = sbr.rel (0) target = $region25
    $region24: #{resblock_forward.3} parent=1 // pred_region
      _
    $region25: #{resblock_forward.3} parent=1 // pred_fallthru
      _
    %v25 = vld [vmem:[%s0] sm:$0xff]
    %v26 = vld [vmem:[%s0 + $0x8] sm:$0xf]
    %v27 = vld [vmem:[%s0 + $0xc] sm:$0xff]
    %v28 = vld [vmem:[%s0 + $0x14] sm:$0xf]
    %v29 = vld [vmem:[%s0 + $0x18] sm:$0xff]
    %v30 = vld [vmem:[%s0 + $0x20] sm:$0xf]
    %v31 = vld [vmem:[%s0 + $0x24] sm:$0xff]
    %v32 = vld [vmem:[%s0 + $0x2c] sm:$0xf]
    %v33 = vld [vmem:[%s0 + $0x30] sm:$0xff]
    %v34 = vld [vmem:[%s0 + $0x38] sm:$0xf]
    %v35 = vld [vmem:[%s0 + $0x3c] sm:$0xff]
    %v36 = vld [vmem:[%s0 + $0x44] sm:$0xf]
    %v37 = vld [vmem:[%s0 + $0x48] sm:$0xff]
    %v38 = vld [vmem:[%s0 + $0x50] sm:$0xf]
    %v39 = vld [vmem:[%s0 + $0x54] sm:$0xff]
    %v40 = vld [vmem:[%s0 + $0x5c] sm:$0xf]
    %v41 = vld [vmem:[%s0 + $0x60] sm:$0xff]
    %v42 = vld [vmem:[%s0 + $0x68] sm:$0xf]
    %v43 = vld [vmem:[%s0 + $0x6c] sm:$0xff]
    %v44 = vld [vmem:[%s0 + $0x74] sm:$0xf]
    %v45 = vld [vmem:[%s0 + $0x78] sm:$0xff]
    %v46 = vld [vmem:[%s0 + $0x80] sm:$0xf]
    %v47 = vld [vmem:[%s0 + $0x84] sm:$0xff]
    %v48 = vld [vmem:[%s0 + $0x8c] sm:$0xf]
    %v49 = vld [vmem:[%s0 + $0x90] sm:$0xff]
    %v50 = vld [vmem:[%s0 + $0x98] sm:$0xf]
    %v51 = vld [vmem:[%s0 + $0x9c] sm:$0xff]
    %v52 = vld [vmem:[%s0 + $0xa4] sm:$0xf]
    %v53 = vld [vmem:[%s0 + $0xa8] sm:$0xff]
    %v54 = vld [vmem:[%s0 + $0xb0] sm:$0xf]
    %v55 = vld [vmem:[%s0 + $0xb4] sm:$0xff]
    %v56 = vld [vmem:[%s0 + $0xbc] sm:$0xf]
    %v57 = vld [vmem:[%s1] sm:$0xf]
    %v58 = vld [vmem:[%s1 + $0x4] sm:$0xf]
    %v59 = vld [vmem:[%s1 + $0x8] sm:$0xf]
    %v60 = vld [vmem:[%s1 + $0xc] sm:$0xf]
    %v61 = vld [vmem:[%s1 + $0x10] sm:$0xf]
    %v62 = vld [vmem:[%s1 + $0x14] sm:$0xf]
    %v63 = vld [vmem:[%s1 + $0x18] sm:$0xf]
    %v64 = vld [vmem:[%s1 + $0x1c] sm:$0xf]
    %v65 = vld [vmem:[%s1 + $0x20] sm:$0xf]
    %v66 = vld [vmem:[%s1 + $0x24] sm:$0xf]
    %v67 = vld [vmem:[%s1 + $0x28] sm:$0xf]
    %v68 = vld [vmem:[%s1 + $0x2c] sm:$0xf]
    %v69 = vld [vmem:[%s1 + $0x30] sm:$0xf]
    %v70 = vld [vmem:[%s1 + $0x34] sm:$0xf]
    %v71 = vld [vmem:[%s1 + $0x38] sm:$0xf]
    %v72 = vld [vmem:[%s1 + $0x3c] sm:$0xf]
    %v73 = vld [vmem:[%s1 + $0x40] sm:$0xf]
    %v74 = vld [vmem:[%s1 + $0x44] sm:$0xf]
    %v75 = vld [vmem:[%s1 + $0x48] sm:$0xf]
    %v76 = vld [vmem:[%s1 + $0x4c] sm:$0xf]
    %v77 = vld [vmem:[%s1 + $0x50] sm:$0xf]
    %v78 = vld [vmem:[%s1 + $0x54] sm:$0xf]
    %v79 = vld [vmem:[%s1 + $0x58] sm:$0xf]
    %v80 = vld [vmem:[%s1 + $0x5c] sm:$0xf]
    %v81 = vld [vmem:[%s1 + $0x60] sm:$0xf]
    %v82 = vld [vmem:[%s1 + $0x64] sm:$0xf]
    %v83 = vld [vmem:[%s1 + $0x68] sm:$0xf]
    %v84 = vld [vmem:[%s1 + $0x6c] sm:$0xf]
    %v85 = vld [vmem:[%s1 + $0x70] sm:$0xf]
    %v86 = vld [vmem:[%s1 + $0x74] sm:$0xf]
    %v87 = vld [vmem:[%s1 + $0x78] sm:$0xf]
    %v88 = vld [vmem:[%s1 + $0x7c] sm:$0xf]
    %v89 = vld [vmem:[%s1 + $0x80] sm:$0xf]
    %v90 = vld [vmem:[%s1 + $0x84] sm:$0xf]
    %v91 = vld [vmem:[%s1 + $0x88] sm:$0xf]
    %v92 = vld [vmem:[%s1 + $0x8c] sm:$0xf]
    %v93 = vld [vmem:[%s3] sm:$0xf]
    %v94 = vld [vmem:[%s3 + $0x4] sm:$0xf]
    %v95 = vld [vmem:[%s3 + $0x8] sm:$0xf]
    %v96 = vld [vmem:[%s3 + $0xc] sm:$0xf]
    %v97 = vld [vmem:[%s3 + $0x10] sm:$0xf]
    %v98 = vld [vmem:[%s3 + $0x14] sm:$0xf]
    %v99 = vld [vmem:[%s3 + $0x18] sm:$0xf]
    %v100 = vld [vmem:[%s3 + $0x1c] sm:$0xf]
    %v101 = vld [vmem:[%s3 + $0x20] sm:$0xf]
    %v102 = vld [vmem:[%s3 + $0x24] sm:$0xf]
    %v103 = vld [vmem:[%s3 + $0x28] sm:$0xf]
    %v104 = vld [vmem:[%s3 + $0x2c] sm:$0xf]
    %v105 = vld [vmem:[%s3 + $0x30] sm:$0xf]
    %v106 = vld [vmem:[%s3 + $0x34] sm:$0xf]
    %v107 = vld [vmem:[%s3 + $0x38] sm:$0xf]
    %v108 = vld [vmem:[%s3 + $0x3c] sm:$0xf]
    %v109 = vld [vmem:[%s4] sm:$0xf]
    %v110 = vld [vmem:[%s4 + $0x4] sm:$0xf]
    %v127 = vunpack.c.l.b16 %v93
    %v128 = vunpack.c.l.b16 %v94
    %v129 = vunpack.c.l.b16 %v95
    %v130 = vunpack.c.l.b16 %v96
    %v131 = vunpack.c.l.b16 %v97
    %v132 = vunpack.c.l.b16 %v98
    %v133 = vunpack.c.l.b16 %v99
    %v134 = vunpack.c.l.b16 %v100
    %v135 = vunpack.c.l.b16 %v101
    %v136 = vunpack.c.l.b16 %v102
    %v137 = vunpack.c.l.b16 %v103
    %v138 = vunpack.c.l.b16 %v104
    %v139 = vunpack.c.l.b16 %v105
    %v140 = vunpack.c.l.b16 %v106
    %v141 = vunpack.c.l.b16 %v107
    %v142 = vunpack.c.l.b16 %v108
    %v143 = vpack.c.b16 %v128, %v127
    %v144 = vpack.c.b16 %v130, %v129
    %v145 = vpack.c.b16 %v132, %v131
    %v146 = vpack.c.b16 %v134, %v133
    %v147 = vpack.c.b16 %v136, %v135
    %v148 = vpack.c.b16 %v138, %v137
    %v149 = vpack.c.b16 %v140, %v139
    %v150 = vpack.c.b16 %v142, %v141
    %v153 = vunpack.c.l.b16 %v109
    %v154 = vunpack.c.l.b16 %v110
    %v155 = vpack.c.b16 %v154, %v153
    %vm157 = vcmask 130048
    %v159 = vsel %vm157, %v143, 0
    %v162 = vsel %vm157, %v144, 0
    %v165 = vsel %vm157, %v145, 0
    %v168 = vsel %vm157, %v146, 0
    %v171 = vsel %vm157, %v147, 0
    %v174 = vsel %vm157, %v148, 0
    %v177 = vsel %vm157, %v149, 0
    %v180 = vsel %vm157, %v150, 0
    %182 = vmatprep.subr.bf16.mxu0 0
    %183 = vmatpush1.bf16.msra.mxu0 %v155
    %184 = vmatprep.subr.bf16.mxu0 0
    %185 = vmatpush1.bf16.msra.mxu0 0
    %186 = vmatprep.subr.bf16.mxu0 0
    %187 = vmatpush1.bf16.msra.mxu0 0
    %188 = vmatprep.subr.bf16.mxu0 0
    %189 = vmatpush1.bf16.msra.mxu0 0
    %190 = vmatprep.subr.bf16.mxu0 0
    %191 = vmatpush1.bf16.msra.mxu0 0
    %192 = vmatprep.subr.bf16.mxu0 0
    %193 = vmatpush1.bf16.msra.mxu0 0
    %194 = vmatprep.subr.bf16.mxu0 0
    %195 = vmatpush1.bf16.msra.mxu0 0
    %196 = vmatprep.subr.bf16.mxu0 0
    %197 = vmatpush1.bf16.msra.mxu0 0
    %198 = vmatprep.subr.bf16.mxu0 0
    %199 = vmatpush1.bf16.msra.mxu0 0
    %200 = vmatprep.subr.bf16.mxu0 0
    %201 = vmatpush1.bf16.msra.mxu0 0
    %202 = vmatprep.subr.bf16.mxu0 0
    %203 = vmatpush1.bf16.msra.mxu0 0
    %204 = vmatprep.subr.bf16.mxu0 0
    %205 = vmatpush1.bf16.msra.mxu0 0
    %206 = vmatprep.subr.bf16.mxu0 0
    %207 = vmatpush1.bf16.msra.mxu0 0
    %208 = vmatprep.subr.bf16.mxu0 0
    %209 = vmatpush1.bf16.msra.mxu0 0
    %210 = vmatprep.subr.bf16.mxu0 0
    %211 = vmatpush1.bf16.msra.mxu0 0
    %212 = vmatprep.subr.bf16.mxu0 0
    %213 = vmatpush1.bf16.msra.mxu0 0
    %214 = vmatprep.mubr.bf16.mxu0 0
    %215 = vmatmul.mubr.bf16.gmra.mrb[0].mxu0 %v159
    %v216 = vpop.f32.mrb[0].mxu0
    %v217 = vadd.f32 0.0, %v216
    %v218 = vpop.f32.mrb[0].mxu0
    %v219 = vpop.f32.mrb[0].mxu0
    %v220 = vadd.f32 0.0, %v219
    %v221 = vpop.f32.mrb[0].mxu0
    %222 = vmatprep.mubr.bf16.mxu0 0
    %223 = vmatmul.mubr.bf16.gmra.mrb[0].mxu0 %v162
    %v224 = vpop.f32.mrb[0].mxu0
    %v225 = vadd.f32 0.0, %v224
    %v226 = vpop.f32.mrb[0].mxu0
    %v227 = vpop.f32.mrb[0].mxu0
    %v228 = vadd.f32 0.0, %v227
    %v229 = vpop.f32.mrb[0].mxu0
    %230 = vmatprep.mubr.bf16.mxu0 0
    %231 = vmatmul.mubr.bf16.gmra.mrb[0].mxu0 %v165
    %v232 = vpop.f32.mrb[0].mxu0
    %v233 = vadd.f32 0.0, %v232
    %v234 = vpop.f32.mrb[0].mxu0
    %v235 = vpop.f32.mrb[0].mxu0
    %v236 = vadd.f32 0.0, %v235
    %v237 = vpop.f32.mrb[0].mxu0
    %238 = vmatprep.mubr.bf16.mxu0 0
    %239 = vmatmul.mubr.bf16.gmra.mrb[0].mxu0 %v168
    %v240 = vpop.f32.mrb[0].mxu0
    %v241 = vadd.f32 0.0, %v240
    %v242 = vpop.f32.mrb[0].mxu0
    %v243 = vpop.f32.mrb[0].mxu0
    %v244 = vadd.f32 0.0, %v243
    %v245 = vpop.f32.mrb[0].mxu0
    %246 = vmatprep.mubr.bf16.mxu0 0
    %247 = vmatmul.mubr.bf16.gmra.mrb[0].mxu0 %v171
    %v248 = vpop.f32.mrb[0].mxu0
    %v249 = vadd.f32 0.0, %v248
    %v250 = vpop.f32.mrb[0].mxu0
    %v251 = vpop.f32.mrb[0].mxu0
    %v252 = vadd.f32 0.0, %v251
    %v253 = vpop.f32.mrb[0].mxu0
    %254 = vmatprep.mubr.bf16.mxu0 0
    %255 = vmatmul.mubr.bf16.gmra.mrb[0].mxu0 %v174
    %v256 = vpop.f32.mrb[0].mxu0
    %v257 = vadd.f32 0.0, %v256
    %v258 = vpop.f32.mrb[0].mxu0
    %v259 = vpop.f32.mrb[0].mxu0
    %v260 = vadd.f32 0.0, %v259
    %v261 = vpop.f32.mrb[0].mxu0
    %262 = vmatprep.mubr.bf16.mxu0 0
    %263 = vmatmul.mubr.bf16.gmra.mrb[0].mxu0 %v177
    %v264 = vpop.f32.mrb[0].mxu0
    %v265 = vadd.f32 0.0, %v264
    %v266 = vpop.f32.mrb[0].mxu0
    %v267 = vpop.f32.mrb[0].mxu0
    %v268 = vadd.f32 0.0, %v267
    %v269 = vpop.f32.mrb[0].mxu0
    %270 = vmatprep.mubr.bf16.mxu0 0
    %271 = vmatmul.mubr.bf16.gmra.mrb[0].mxu0 %v180
    %v272 = vpop.f32.mrb[0].mxu0
    %v273 = vadd.f32 0.0, %v272
    %v274 = vpop.f32.mrb[0].mxu0
    %v275 = vpop.f32.mrb[0].mxu0
    %v276 = vadd.f32 0.0, %v275
    %v277 = vpop.f32.mrb[0].mxu0
    %278 = vdwg.mxu0
    %v311 = vunpack.c.l.b16 %v25
    %v312 = vunpack.c.h.b16 %v25
    %v313 = vunpack.c.l.b16 %v26
    %v314 = vunpack.c.l.b16 %v27
    %v315 = vunpack.c.h.b16 %v27
    %v316 = vunpack.c.l.b16 %v28
    %v317 = vunpack.c.l.b16 %v29
    %v318 = vunpack.c.h.b16 %v29
    %v319 = vunpack.c.l.b16 %v30
    %v320 = vunpack.c.l.b16 %v31
    %v321 = vunpack.c.h.b16 %v31
    %v322 = vunpack.c.l.b16 %v32
    %v323 = vunpack.c.l.b16 %v33
    %v324 = vunpack.c.h.b16 %v33
    %v325 = vunpack.c.l.b16 %v34
    %v326 = vunpack.c.l.b16 %v35
    %v327 = vunpack.c.h.b16 %v35
    %v328 = vunpack.c.l.b16 %v36
    %v329 = vunpack.c.l.b16 %v37
    %v330 = vunpack.c.h.b16 %v37
    %v331 = vunpack.c.l.b16 %v38
    %v332 = vunpack.c.l.b16 %v39
    %v333 = vunpack.c.h.b16 %v39
    %v334 = vunpack.c.l.b16 %v40
    %v335 = vunpack.c.l.b16 %v41
    %v336 = vunpack.c.h.b16 %v41
    %v337 = vunpack.c.l.b16 %v42
    %v338 = vunpack.c.l.b16 %v43
    %v339 = vunpack.c.h.b16 %v43
    %v340 = vunpack.c.l.b16 %v44
    %v341 = vunpack.c.l.b16 %v45
    %v342 = vunpack.c.h.b16 %v45
    %v343 = vunpack.c.l.b16 %v46
    %v344 = vunpack.c.l.b16 %v47
    %v345 = vunpack.c.h.b16 %v47
    %v346 = vunpack.c.l.b16 %v48
    %v347 = vunpack.c.l.b16 %v49
    %v348 = vunpack.c.h.b16 %v49
    %v349 = vunpack.c.l.b16 %v50
    %v350 = vunpack.c.l.b16 %v51
    %v351 = vunpack.c.h.b16 %v51
    %v352 = vunpack.c.l.b16 %v52
    %v353 = vunpack.c.l.b16 %v53
    %v354 = vunpack.c.h.b16 %v53
    %v355 = vunpack.c.l.b16 %v54
    %v356 = vunpack.c.l.b16 %v55
    %v357 = vunpack.c.h.b16 %v55
    %v358 = vunpack.c.l.b16 %v56
    %v359 = vpack.c.b16 %v314, %v311
    %v360 = vpack.c.b16 %v315, %v312
    %v361 = vpack.c.b16 %v316, %v313
    %v362 = vpack.c.b16 %v320, %v317
    %v363 = vpack.c.b16 %v321, %v318
    %v364 = vpack.c.b16 %v322, %v319
    %v365 = vpack.c.b16 %v326, %v323
    %v366 = vpack.c.b16 %v327, %v324
    %v367 = vpack.c.b16 %v328, %v325
    %v368 = vpack.c.b16 %v332, %v329
    %v369 = vpack.c.b16 %v333, %v330
    %v370 = vpack.c.b16 %v334, %v331
    %v371 = vpack.c.b16 %v338, %v335
    %v372 = vpack.c.b16 %v339, %v336
    %v373 = vpack.c.b16 %v340, %v337
    %v374 = vpack.c.b16 %v344, %v341
    %v375 = vpack.c.b16 %v345, %v342
    %v376 = vpack.c.b16 %v346, %v343
    %v377 = vpack.c.b16 %v350, %v347
    %v378 = vpack.c.b16 %v351, %v348
    %v379 = vpack.c.b16 %v352, %v349
    %v380 = vpack.c.b16 %v356, %v353
    %v381 = vpack.c.b16 %v357, %v354
    %v382 = vpack.c.b16 %v358, %v355
    %v435 = vunpack.c.l.b16 %v57
    %v436 = vunpack.c.l.b16 %v58
    %v437 = vunpack.c.l.b16 %v59
    %v438 = vunpack.c.l.b16 %v60
    %v439 = vunpack.c.l.b16 %v61
    %v440 = vunpack.c.l.b16 %v62
    %v441 = vunpack.c.l.b16 %v63
    %v442 = vunpack.c.l.b16 %v64
    %v443 = vunpack.c.l.b16 %v65
    %v444 = vunpack.c.l.b16 %v66
    %v445 = vunpack.c.l.b16 %v67
    %v446 = vunpack.c.l.b16 %v68
    %v447 = vunpack.c.l.b16 %v69
    %v448 = vunpack.c.l.b16 %v70
    %v449 = vunpack.c.l.b16 %v71
    %v450 = vunpack.c.l.b16 %v72
    %v451 = vunpack.c.l.b16 %v73
    %v452 = vunpack.c.l.b16 %v74
    %v453 = vunpack.c.l.b16 %v75
    %v454 = vunpack.c.l.b16 %v76
    %v455 = vunpack.c.l.b16 %v77
    %v456 = vunpack.c.l.b16 %v78
    %v457 = vunpack.c.l.b16 %v79
    %v458 = vunpack.c.l.b16 %v80
    %v459 = vunpack.c.l.b16 %v81
    %v460 = vunpack.c.l.b16 %v82
    %v461 = vunpack.c.l.b16 %v83
    %v462 = vunpack.c.l.b16 %v84
    %v463 = vunpack.c.l.b16 %v85
    %v464 = vunpack.c.l.b16 %v86
    %v465 = vunpack.c.l.b16 %v87
    %v466 = vunpack.c.l.b16 %v88
    %v467 = vunpack.c.l.b16 %v89
    %v468 = vunpack.c.l.b16 %v90
    %v469 = vunpack.c.l.b16 %v91
    %v470 = vunpack.c.l.b16 %v92
    %v471 = vpack.c.b16 %v436, %v435
    %v472 = vpack.c.b16 %v438, %v437
    %v473 = vpack.c.b16 %v440, %v439
    %v474 = vpack.c.b16 %v442, %v441
    %v475 = vpack.c.b16 %v444, %v443
    %v476 = vpack.c.b16 %v446, %v445
    %v477 = vpack.c.b16 %v448, %v447
    %v478 = vpack.c.b16 %v450, %v449
    %v479 = vpack.c.b16 %v452, %v451
    %v480 = vpack.c.b16 %v454, %v453
    %v481 = vpack.c.b16 %v456, %v455
    %v482 = vpack.c.b16 %v458, %v457
    %v483 = vpack.c.b16 %v460, %v459
    %v484 = vpack.c.b16 %v462, %v461
    %v485 = vpack.c.b16 %v464, %v463
    %v486 = vpack.c.b16 %v466, %v465
    %v487 = vpack.c.b16 %v468, %v467
    %v488 = vpack.c.b16 %v470, %v469
    %vm507 = vcmask 261120
    %v509 = vsel %vm507, %v361, 0
    %v512 = vsel %vm507, %v364, 0
    %v515 = vsel %vm507, %v367, 0
    %v518 = vsel %vm507, %v370, 0
    %v521 = vsel %vm507, %v373, 0
    %v524 = vsel %vm507, %v376, 0
    %v527 = vsel %vm507, %v379, 0
    %v530 = vsel %vm507, %v382, 0
    %532 = vmatprep.subr.bf16.mxu0 0
    %533 = vmatpush1.bf16.msra.mxu0 %v471
    %534 = vmatprep.subr.bf16.mxu0 0
    %535 = vmatpush1.bf16.msra.mxu0 %v472
    %536 = vmatprep.subr.bf16.mxu0 0
    %537 = vmatpush1.bf16.msra.mxu0 %v473
    %538 = vmatprep.subr.bf16.mxu0 0
    %539 = vmatpush1.bf16.msra.mxu0 %v474
    %540 = vmatprep.subr.bf16.mxu0 0
    %541 = vmatpush1.bf16.msra.mxu0 %v475
    %542 = vmatprep.subr.bf16.mxu0 0
    %543 = vmatpush1.bf16.msra.mxu0 %v476
    %544 = vmatprep.subr.bf16.mxu0 0
    %545 = vmatpush1.bf16.msra.mxu0 %v477
    %546 = vmatprep.subr.bf16.mxu0 0
    %547 = vmatpush1.bf16.msra.mxu0 %v478
    %548 = vmatprep.subr.bf16.mxu0 0
    %549 = vmatpush1.bf16.msra.mxu0 %v479
    %550 = vmatprep.subr.bf16.mxu0 0
    %551 = vmatpush1.bf16.msra.mxu0 %v480
    %552 = vmatprep.subr.bf16.mxu0 0
    %553 = vmatpush1.bf16.msra.mxu0 %v481
    %554 = vmatprep.subr.bf16.mxu0 0
    %555 = vmatpush1.bf16.msra.mxu0 %v482
    %556 = vmatprep.subr.bf16.mxu0 0
    %557 = vmatpush1.bf16.msra.mxu0 %v483
    %558 = vmatprep.subr.bf16.mxu0 0
    %559 = vmatpush1.bf16.msra.mxu0 %v484
    %560 = vmatprep.subr.bf16.mxu0 0
    %561 = vmatpush1.bf16.msra.mxu0 %v485
    %562 = vmatprep.subr.bf16.mxu0 0
    %563 = vmatpush1.bf16.msra.mxu0 %v486
    %564 = vmatprep.mubr.bf16.mxu0 %v360
    %565 = vmatmul.mubr.bf16.gmra.mrb[0].mxu0 %v359
    %v566 = vpop.f32.mrb[0].mxu0
    %v567 = vadd.f32 %v217, %v566
    %v568 = vpop.f32.mrb[0].mxu0
    %v569 = vpop.f32.mrb[0].mxu0
    %v570 = vadd.f32 %v220, %v569
    %v571 = vpop.f32.mrb[0].mxu0
    %572 = vmatprep.mubr.bf16.mxu0 %v363
    %573 = vmatmul.mubr.bf16.gmra.mrb[0].mxu0 %v362
    %v574 = vpop.f32.mrb[0].mxu0
    %v575 = vadd.f32 %v225, %v574
    %v576 = vpop.f32.mrb[0].mxu0
    %v577 = vpop.f32.mrb[0].mxu0
    %v578 = vadd.f32 %v228, %v577
    %v579 = vpop.f32.mrb[0].mxu0
    %580 = vmatprep.mubr.bf16.mxu0 %v366
    %581 = vmatmul.mubr.bf16.gmra.mrb[0].mxu0 %v365
    %v582 = vpop.f32.mrb[0].mxu0
    %v583 = vadd.f32 %v233, %v582
    %v584 = vpop.f32.mrb[0].mxu0
    %v585 = vpop.f32.mrb[0].mxu0
    %v586 = vadd.f32 %v236, %v585
    %v587 = vpop.f32.mrb[0].mxu0
    %588 = vmatprep.mubr.bf16.mxu0 %v369
    %589 = vmatmul.mubr.bf16.gmra.mrb[0].mxu0 %v368
    %v590 = vpop.f32.mrb[0].mxu0
    %v591 = vadd.f32 %v241, %v590
    %v592 = vpop.f32.mrb[0].mxu0
    %v593 = vpop.f32.mrb[0].mxu0
    %v594 = vadd.f32 %v244, %v593
    %v595 = vpop.f32.mrb[0].mxu0
    %596 = vmatprep.mubr.bf16.mxu0 %v372
    %597 = vmatmul.mubr.bf16.gmra.mrb[0].mxu0 %v371
    %v598 = vpop.f32.mrb[0].mxu0
    %v599 = vadd.f32 %v249, %v598
    %v600 = vpop.f32.mrb[0].mxu0
    %v601 = vpop.f32.mrb[0].mxu0
    %v602 = vadd.f32 %v252, %v601
    %v603 = vpop.f32.mrb[0].mxu0
    %604 = vmatprep.mubr.bf16.mxu0 %v375
    %605 = vmatmul.mubr.bf16.gmra.mrb[0].mxu0 %v374
    %v606 = vpop.f32.mrb[0].mxu0
    %v607 = vadd.f32 %v257, %v606
    %v608 = vpop.f32.mrb[0].mxu0
    %v609 = vpop.f32.mrb[0].mxu0
    %v610 = vadd.f32 %v260, %v609
    %v611 = vpop.f32.mrb[0].mxu0
    %612 = vmatprep.mubr.bf16.mxu0 %v378
    %613 = vmatmul.mubr.bf16.gmra.mrb[0].mxu0 %v377
    %v614 = vpop.f32.mrb[0].mxu0
    %v615 = vadd.f32 %v265, %v614
    %v616 = vpop.f32.mrb[0].mxu0
    %v617 = vpop.f32.mrb[0].mxu0
    %v618 = vadd.f32 %v268, %v617
    %v619 = vpop.f32.mrb[0].mxu0
    %620 = vmatprep.mubr.bf16.mxu0 %v381
    %621 = vmatmul.mubr.bf16.gmra.mrb[0].mxu0 %v380
    %v622 = vpop.f32.mrb[0].mxu0
    %v623 = vadd.f32 %v273, %v622
    %v624 = vpop.f32.mrb[0].mxu0
    %v625 = vpop.f32.mrb[0].mxu0
    %v626 = vadd.f32 %v276, %v625
    %v627 = vpop.f32.mrb[0].mxu0
    %628 = vdwg.mxu0
    %629 = vmatprep.subr.bf16.mxu0 0
    %630 = vmatpush1.bf16.msra.mxu0 %v487
    %631 = vmatprep.subr.bf16.mxu0 0
    %632 = vmatpush1.bf16.msra.mxu0 %v488
    %633 = vmatprep.subr.bf16.mxu0 0
    %634 = vmatpush1.bf16.msra.mxu0 0
    %635 = vmatprep.subr.bf16.mxu0 0
    %636 = vmatpush1.bf16.msra.mxu0 0
    %637 = vmatprep.subr.bf16.mxu0 0
    %638 = vmatpush1.bf16.msra.mxu0 0
    %639 = vmatprep.subr.bf16.mxu0 0
    %640 = vmatpush1.bf16.msra.mxu0 0
    %641 = vmatprep.subr.bf16.mxu0 0
    %642 = vmatpush1.bf16.msra.mxu0 0
    %643 = vmatprep.subr.bf16.mxu0 0
    %644 = vmatpush1.bf16.msra.mxu0 0
    %645 = vmatprep.subr.bf16.mxu0 0
    %646 = vmatpush1.bf16.msra.mxu0 0
    %647 = vmatprep.subr.bf16.mxu0 0
    %648 = vmatpush1.bf16.msra.mxu0 0
    %649 = vmatprep.subr.bf16.mxu0 0
    %650 = vmatpush1.bf16.msra.mxu0 0
    %651 = vmatprep.subr.bf16.mxu0 0
    %652 = vmatpush1.bf16.msra.mxu0 0
    %653 = vmatprep.subr.bf16.mxu0 0
    %654 = vmatpush1.bf16.msra.mxu0 0
    %655 = vmatprep.subr.bf16.mxu0 0
    %656 = vmatpush1.bf16.msra.mxu0 0
    %657 = vmatprep.subr.bf16.mxu0 0
    %658 = vmatpush1.bf16.msra.mxu0 0
    %659 = vmatprep.subr.bf16.mxu0 0
    %660 = vmatpush1.bf16.msra.mxu0 0
    %661 = vmatprep.mubr.bf16.mxu0 0
    %662 = vmatmul.mubr.bf16.gmra.mrb[0].mxu0 %v509
    %v663 = vpop.f32.mrb[0].mxu0
    %v664 = vadd.f32 %v567, %v663
    %v665 = vpop.f32.mrb[0].mxu0
    %v666 = vpop.f32.mrb[0].mxu0
    %v667 = vadd.f32 %v570, %v666
    %v668 = vpop.f32.mrb[0].mxu0
    %669 = vmatprep.mubr.bf16.mxu0 0
    %670 = vmatmul.mubr.bf16.gmra.mrb[0].mxu0 %v512
    %v671 = vpop.f32.mrb[0].mxu0
    %v672 = vadd.f32 %v575, %v671
    %v673 = vpop.f32.mrb[0].mxu0
    %v674 = vpop.f32.mrb[0].mxu0
    %v675 = vadd.f32 %v578, %v674
    %v676 = vpop.f32.mrb[0].mxu0
    %677 = vmatprep.mubr.bf16.mxu0 0
    %678 = vmatmul.mubr.bf16.gmra.mrb[0].mxu0 %v515
    %v679 = vpop.f32.mrb[0].mxu0
    %v680 = vadd.f32 %v583, %v679
    %v681 = vpop.f32.mrb[0].mxu0
    %v682 = vpop.f32.mrb[0].mxu0
    %v683 = vadd.f32 %v586, %v682
    %v684 = vpop.f32.mrb[0].mxu0
    %685 = vmatprep.mubr.bf16.mxu0 0
    %686 = vmatmul.mubr.bf16.gmra.mrb[0].mxu0 %v518
    %v687 = vpop.f32.mrb[0].mxu0
    %v688 = vadd.f32 %v591, %v687
    %v689 = vpop.f32.mrb[0].mxu0
    %v690 = vpop.f32.mrb[0].mxu0
    %v691 = vadd.f32 %v594, %v690
    %v692 = vpop.f32.mrb[0].mxu0
    %693 = vmatprep.mubr.bf16.mxu0 0
    %694 = vmatmul.mubr.bf16.gmra.mrb[0].mxu0 %v521
    %v695 = vpop.f32.mrb[0].mxu0
    %v696 = vadd.f32 %v599, %v695
    %v697 = vpop.f32.mrb[0].mxu0
    %v698 = vpop.f32.mrb[0].mxu0
    %v699 = vadd.f32 %v602, %v698
    %v700 = vpop.f32.mrb[0].mxu0
    %701 = vmatprep.mubr.bf16.mxu0 0
    %702 = vmatmul.mubr.bf16.gmra.mrb[0].mxu0 %v524
    %v703 = vpop.f32.mrb[0].mxu0
    %v704 = vadd.f32 %v607, %v703
    %v705 = vpop.f32.mrb[0].mxu0
    %v706 = vpop.f32.mrb[0].mxu0
    %v707 = vadd.f32 %v610, %v706
    %v708 = vpop.f32.mrb[0].mxu0
    %709 = vmatprep.mubr.bf16.mxu0 0
    %710 = vmatmul.mubr.bf16.gmra.mrb[0].mxu0 %v527
    %v711 = vpop.f32.mrb[0].mxu0
    %v712 = vadd.f32 %v615, %v711
    %v713 = vpop.f32.mrb[0].mxu0
    %v714 = vpop.f32.mrb[0].mxu0
    %v715 = vadd.f32 %v618, %v714
    %v716 = vpop.f32.mrb[0].mxu0
    %717 = vmatprep.mubr.bf16.mxu0 0
    %718 = vmatmul.mubr.bf16.gmra.mrb[0].mxu0 %v530
    %v719 = vpop.f32.mrb[0].mxu0
    %v720 = vadd.f32 %v623, %v719
    %v721 = vpop.f32.mrb[0].mxu0
    %v722 = vpop.f32.mrb[0].mxu0
    %v723 = vadd.f32 %v626, %v722
    %v724 = vpop.f32.mrb[0].mxu0
    %725 = vdwg.mxu0
    %v726 = vld [vmem:[%s2] sm:$0x1]
    %v728 = vlaneseq
    %v729 = vshrl.u32 %v728, 7
    %v730 = vsub.s32 0, %v729
    %v731 = vrot.slane %v726, %v730
    %v733 = vadd.f32 %v664, %v731
    %v734 = vadd.f32 %v667, %v731
    %v735 = vadd.f32 %v672, %v731
    %v736 = vadd.f32 %v675, %v731
    %v737 = vadd.f32 %v680, %v731
    %v738 = vadd.f32 %v683, %v731
    %v739 = vadd.f32 %v688, %v731
    %v740 = vadd.f32 %v691, %v731
    %v741 = vadd.f32 %v696, %v731
    %v742 = vadd.f32 %v699, %v731
    %v743 = vadd.f32 %v704, %v731
    %v744 = vadd.f32 %v707, %v731
    %v745 = vadd.f32 %v712, %v731
    %v746 = vadd.f32 %v715, %v731
    %v747 = vadd.f32 %v720, %v731
    %v748 = vadd.f32 %v723, %v731
    %v749 = vld [vmem:[%s5] sm:$0x1]
    %v751 = vlaneseq
    %v752 = vshrl.u32 %v751, 7
    %v753 = vsub.s32 0, %v752
    %v754 = vrot.slane %v749, %v753
    %v756 = vadd.f32 %v733, %v754
    %v757 = vadd.f32 %v734, %v754
    %v758 = vadd.f32 %v735, %v754
    %v759 = vadd.f32 %v736, %v754
    %v760 = vadd.f32 %v737, %v754
    %v761 = vadd.f32 %v738, %v754
    %v762 = vadd.f32 %v739, %v754
    %v763 = vadd.f32 %v740, %v754
    %v764 = vadd.f32 %v741, %v754
    %v765 = vadd.f32 %v742, %v754
    %v766 = vadd.f32 %v743, %v754
    %v767 = vadd.f32 %v744, %v754
    %v768 = vadd.f32 %v745, %v754
    %v769 = vadd.f32 %v746, %v754
    %v770 = vadd.f32 %v747, %v754
    %v771 = vadd.f32 %v748, %v754
    %v772 = vmax.f32 %v756, 0.0
    %v773 = vmax.f32 %v757, 0.0
    %v774 = vmax.f32 %v758, 0.0
    %v775 = vmax.f32 %v759, 0.0
    %v776 = vmax.f32 %v760, 0.0
    %v777 = vmax.f32 %v761, 0.0
    %v778 = vmax.f32 %v762, 0.0
    %v779 = vmax.f32 %v763, 0.0
    %v780 = vmax.f32 %v764, 0.0
    %v781 = vmax.f32 %v765, 0.0
    %v782 = vmax.f32 %v766, 0.0
    %v783 = vmax.f32 %v767, 0.0
    %v784 = vmax.f32 %v768, 0.0
    %v785 = vmax.f32 %v769, 0.0
    %v786 = vmax.f32 %v770, 0.0
    %v787 = vmax.f32 %v771, 0.0
    %788 = vst.msk [vmem:[#allocation2] sm:$0xff] %vm507, %v772
    %789 = vst.msk [vmem:[#allocation2 + $0x8] sm:$0xff] %vm507, %v773
    %790 = vst.msk [vmem:[#allocation2 + $0x10] sm:$0xff] %vm507, %v774
    %791 = vst.msk [vmem:[#allocation2 + $0x18] sm:$0xff] %vm507, %v775
    %792 = vst.msk [vmem:[#allocation2 + $0x20] sm:$0xff] %vm507, %v776
    %793 = vst.msk [vmem:[#allocation2 + $0x28] sm:$0xff] %vm507, %v777
    %794 = vst.msk [vmem:[#allocation2 + $0x30] sm:$0xff] %vm507, %v778
    %795 = vst.msk [vmem:[#allocation2 + $0x38] sm:$0xff] %vm507, %v779
    %796 = vst.msk [vmem:[#allocation2 + $0x40] sm:$0xff] %vm507, %v780
    %797 = vst.msk [vmem:[#allocation2 + $0x48] sm:$0xff] %vm507, %v781
    %798 = vst.msk [vmem:[#allocation2 + $0x50] sm:$0xff] %vm507, %v782
    %799 = vst.msk [vmem:[#allocation2 + $0x58] sm:$0xff] %vm507, %v783
    %800 = vst.msk [vmem:[#allocation2 + $0x60] sm:$0xff] %vm507, %v784
    %801 = vst.msk [vmem:[#allocation2 + $0x68] sm:$0xff] %vm507, %v785
    %802 = vst.msk [vmem:[#allocation2 + $0x70] sm:$0xff] %vm507, %v786
    %803 = vst.msk [vmem:[#allocation2 + $0x78] sm:$0xff] %vm507, %v787
    // Predicated region
    $region26: #{resblock_forward.3} parent=1 // pred_check
      _
    $region27: #{resblock_forward.3} parent=1 // pred_check_branch
      %805 = sbr.rel (0) target = $region29
    $region28: #{resblock_forward.3} parent=1 // pred_region
      %s807 = ssub.s32 2048, 2048
      %808 = vsyncadd [#allocation3], %s807
      %s809 = sshll.u32 [#allocation2], 4
      %s810 = int_to_ptr.vmem [resolvable:$true] %s809
      %815 = dma.vmem_to_hbm [thread:$0]  %s810, 2048, %s6, [#allocation3], 128, 128, 8
    $region29: #{resblock_forward.3} parent=1 // pred_fallthru
      _
    // Predicated region
    $region30: #{resblock_forward.3} parent=1 // pred_check
      _
    $region31: #{resblock_forward.3} parent=1 // pred_check_branch
      %817 = sbr.rel (0) target = $region33
    $region32: #{resblock_forward.3} parent=1 // pred_region
      %818 = dma.done [#allocation3], 2048
    $region33: #{resblock_forward.3} parent=1 // pred_fallthru
      _
    %819 = vsyncpa [#allocation3], 1

</llo_original>
